<compile_context>
chip_gen: v6e
topology: v6e:2x2x1
jax: 0.10.0
libtpu: 0.0.40
codegen_flags: <defaults>
</compile_context>

<pallas_src>
import jax
import jax.numpy as jnp
from jax.experimental import pallas as pl
from jax.experimental.pallas import tpu as pltpu

INPUT_SIZE = 30     # Wisconsin breast-cancer feature count (x_train_trans.shape[1])
NUM_CLASSES = 2     # nn.Linear(INPUT_SIZE, 2)


# ----------------------------------------------------------------------------
# Element-wise device nonlinearities (surrogates for tsk.TSKONE / tsk.TSKONEout)
# ----------------------------------------------------------------------------
def _tskone(x):
    # Operating window is [30, 45] (MinMaxScaler((30, 45))): normalize and saturate.
    # TSKONE(x, mode) is called with mode = ones_like(x) in this model, so the
    # mode==1 branch is taken everywhere; the select is elided in the kernel.
    xn = (x - 30.0) / 15.0
    return jnp.tanh(2.0 * xn)


def _tskone_out(x):
    # Output-stage saturating response.
    return 2.0 * jnp.tanh(0.5 * x)


# ----------------------------------------------------------------------------
# Pallas kernel: TSKONE -> linear -> TSKONEout -> log_softmax, fused per batch tile
# Transposed layout: x tile (INPUT_SIZE, TB), output tile (NUM_CLASSES, TB).
# ----------------------------------------------------------------------------
def seqnet_kernel(x_ref, w_ref, b_ref, o_ref):
    # (30, TB): batch on lanes -> fully packed vregs for the element-wise stage.
    t = _tskone(x_ref[...])

    # F.linear in transposed form: W (2, 30) @ t (30, TB) + b (2, 1) -> (2, TB).
    # Lane (N) dim of the MXU output is the batch tile -> fully populated columns.
    h = jnp.dot(w_ref[...], t, preferred_element_type=jnp.float32) + b_ref[...]

    y = _tskone_out(h)                                   # (2, TB) element-wise

    # 2-class log_softmax closed form (no cross-lane reduction):
    #   d = y1 - y0
    #   log_softmax_0 = -softplus(d)
    #   log_softmax_1 = -softplus(-d) = d - softplus(d)
    d = y[1:2, :] - y[0:1, :]                            # (1, TB)
    sp = jnp.maximum(d, 0.0) + jnp.log(1.0 + jnp.exp(-jnp.abs(d)))  # stable softplus
    o_ref[0:1, :] = -sp
    o_ref[1:2, :] = d - sp


def seqnet_forward(x, weight, bias, *, tile_b=512):
    """x: (..., INPUT_SIZE) f32; weight: (NUM_CLASSES, INPUT_SIZE); bias: (NUM_CLASSES,)."""
    x = x.reshape(-1, INPUT_SIZE).astype(jnp.float32)    # x.view(-1, INPUT_SIZE)
    B = x.shape[0]

    # Batch on the lane axis.
    xt = x.T                                             # (INPUT_SIZE, B)

    # Effective batch tile: multiple of 128, no larger than the rounded-up batch.
    b_round = ((B + 127) // 128) * 128
    tb = max(128, min(((tile_b + 127) // 128) * 128, b_round))
    b_pad = ((B + tb - 1) // tb) * tb
    if b_pad != B:
        # Pad the ragged tail in the wrapper; padded columns produce finite junk
        # that is sliced off below (no cross-batch reductions in the kernel).
        xt = jnp.pad(xt, ((0, 0), (0, b_pad - B)))

    w = weight.astype(jnp.float32)                       # (NUM_CLASSES, INPUT_SIZE)
    b2 = bias.reshape(NUM_CLASSES, 1).astype(jnp.float32)

    out_t = pl.pallas_call(
        seqnet_kernel,
        out_shape=jax.ShapeDtypeStruct((NUM_CLASSES, b_pad), jnp.float32),
        grid=(b_pad // tb,),
        in_specs=[
            pl.BlockSpec((INPUT_SIZE, tb), lambda i: (0, i)),              # x tile (batch on lanes)
            pl.BlockSpec((NUM_CLASSES, INPUT_SIZE), lambda i: (0, 0)),     # full W (2, 30)
            pl.BlockSpec((NUM_CLASSES, 1), lambda i: (0, 0)),              # bias (2, 1)
        ],
        out_specs=pl.BlockSpec((NUM_CLASSES, tb), lambda i: (0, i)),       # lane-dense output
        compiler_params=pltpu.CompilerParams(
            dimension_semantics=("parallel",)),          # shards across v7x's 2 TCs
    )(xt, w, b2)

    # Back to the module's (B, NUM_CLASSES) layout, dropping pad columns.
    return out_t[:, :B].T


# ----------------------------------------------------------------------------
# Pure-JAX reference (same surrogate math) for a correctness check
# ----------------------------------------------------------------------------
def seqnet_reference(x, weight, bias):
    x = x.reshape(-1, INPUT_SIZE).astype(jnp.float32)
    t = _tskone(x)
    h = t @ weight.T + bias
    y = _tskone_out(h)
    return jax.nn.log_softmax(y, axis=1)


if __name__ == "__main__":
    key = jax.random.PRNGKey(0)
    k_x, k_w, k_b = jax.random.split(key, 3)

    batch = 8
    # Inputs mimic MinMaxScaler((30, 45)) output range.
    x = jax.random.uniform(k_x, (batch, INPUT_SIZE), jnp.float32,
                           minval=30.0, maxval=45.0)

    # Deterministic nn.Linear(INPUT_SIZE, 2)-style init: U(-1/sqrt(fan_in), 1/sqrt(fan_in)).
    bound = 1.0 / jnp.sqrt(jnp.float32(INPUT_SIZE))
    weight = jax.random.uniform(k_w, (NUM_CLASSES, INPUT_SIZE), jnp.float32,
                                minval=-bound, maxval=bound)
    bias = jax.random.uniform(k_b, (NUM_CLASSES,), jnp.float32,
                              minval=-bound, maxval=bound)

    out = seqnet_forward(x, weight, bias)
    out = jax.block_until_ready(out)

    ref = seqnet_reference(x, weight, bias)
    assert out.shape == (batch, NUM_CLASSES)
    assert jnp.allclose(out, ref, atol=1e-5, rtol=1e-5), "mismatch vs JAX reference"

    print("KERNEL_OK")
</pallas_src>

<mosaic_0001>
module attributes {stable_mosaic.version = 11 : i64} {
  func.func @seqnet_kernel(%arg0: i32, %arg1: memref<30x128xf32, #tpu.memory_space<vmem>>, %arg2: memref<2x30xf32, #tpu.memory_space<vmem>>, %arg3: memref<2x1xf32, #tpu.memory_space<vmem>>, %arg4: memref<2x128xf32, #tpu.memory_space<vmem>>) attributes {dimension_semantics = [#tpu.dimension_semantics<parallel>], iteration_bounds = array<i64: 1>, scalar_prefetch = 0 : i64, scratch_operands = 0 : i64, tpu.core_type = #tpu.core_type<tc>, window_params = [{transform_indices = @transform_0, window_bounds = array<i64: 30, 128>}, {pipeline_mode = #tpu.pipeline_mode<synchronous>, transform_indices = @transform_1, window_bounds = array<i64: 2, 30>}, {pipeline_mode = #tpu.pipeline_mode<synchronous>, transform_indices = @transform_2, window_bounds = array<i64: 2, 1>}, {transform_indices = @transform_3, window_bounds = array<i64: 2, 128>}]} {
    %c0 = arith.constant 0 : index
    %c0_0 = arith.constant 0 : index
    %0 = vector.load %arg1[%c0, %c0_0] : memref<30x128xf32, #tpu.memory_space<vmem>>, vector<30x128xf32>
    %cst = arith.constant 3.000000e+01 : f32
    %1 = vector.broadcast %cst : f32 to vector<30x128xf32>
    %2 = arith.subf %0, %1 : vector<30x128xf32>
    %cst_1 = arith.constant 1.500000e+01 : f32
    %3 = vector.broadcast %cst_1 : f32 to vector<30x128xf32>
    %4 = arith.divf %2, %3 : vector<30x128xf32>
    %cst_2 = arith.constant 2.000000e+00 : f32
    %5 = vector.broadcast %cst_2 : f32 to vector<30x128xf32>
    %6 = arith.mulf %5, %4 : vector<30x128xf32>
    %7 = math.tanh %6 : vector<30x128xf32>
    %c0_3 = arith.constant 0 : index
    %c0_4 = arith.constant 0 : index
    %8 = vector.load %arg2[%c0_3, %c0_4] : memref<2x30xf32, #tpu.memory_space<vmem>>, vector<2x30xf32>
    %cst_5 = arith.constant dense<0.000000e+00> : vector<2x128xf32>
    %9 = tpu.matmul %8, %7, %cst_5 {dimension_numbers = #tpu.dot_dimension_numbers<[1], [0], [0], [1], [0, 0, 1, 1], [], []>} : vector<2x30xf32>, vector<30x128xf32>, vector<2x128xf32> -> vector<2x128xf32>
    %c0_6 = arith.constant 0 : index
    %c0_7 = arith.constant 0 : index
    %10 = vector.load %arg3[%c0_6, %c0_7] : memref<2x1xf32, #tpu.memory_space<vmem>>, vector<2x1xf32>
    %11 = vector.broadcast %10 : vector<2x1xf32> to vector<2x128xf32>
    %12 = arith.addf %9, %11 : vector<2x128xf32>
    %cst_8 = arith.constant 5.000000e-01 : f32
    %13 = vector.broadcast %cst_8 : f32 to vector<2x128xf32>
    %14 = arith.mulf %13, %12 : vector<2x128xf32>
    %15 = math.tanh %14 : vector<2x128xf32>
    %cst_9 = arith.constant 2.000000e+00 : f32
    %16 = vector.broadcast %cst_9 : f32 to vector<2x128xf32>
    %17 = arith.mulf %16, %15 : vector<2x128xf32>
    %18 = vector.extract_strided_slice %17 {offsets = [1, 0], sizes = [1, 128], strides = [1, 1]} : vector<2x128xf32> to vector<1x128xf32>
    %19 = vector.extract_strided_slice %17 {offsets = [0, 0], sizes = [1, 128], strides = [1, 1]} : vector<2x128xf32> to vector<1x128xf32>
    %20 = arith.subf %18, %19 : vector<1x128xf32>
    %cst_10 = arith.constant 0.000000e+00 : f32
    %21 = vector.broadcast %cst_10 : f32 to vector<1x128xf32>
    %22 = arith.maximumf %20, %21 : vector<1x128xf32>
    %23 = math.absf %20 : vector<1x128xf32>
    %cst_11 = arith.constant 0.000000e+00 : f32
    %24 = vector.broadcast %cst_11 : f32 to vector<1x128xf32>
    %25 = arith.subf %24, %23 : vector<1x128xf32>
    %26 = math.exp %25 : vector<1x128xf32>
    %cst_12 = arith.constant 1.000000e+00 : f32
    %27 = vector.broadcast %cst_12 : f32 to vector<1x128xf32>
    %28 = arith.addf %27, %26 : vector<1x128xf32>
    %29 = math.log %28 : vector<1x128xf32>
    %30 = arith.addf %22, %29 : vector<1x128xf32>
    %cst_13 = arith.constant 0.000000e+00 : f32
    %31 = vector.broadcast %cst_13 : f32 to vector<1x128xf32>
    %32 = arith.subf %31, %30 : vector<1x128xf32>
    %c0_14 = arith.constant 0 : index
    %c0_15 = arith.constant 0 : index
    %33 = vector.load %arg4[%c0_14, %c0_15] : memref<2x128xf32, #tpu.memory_space<vmem>>, vector<1x128xf32>
    tpu.vector_store %arg4[%c0_14, %c0_15], %32 {strides = array<i32>} : memref<2x128xf32, #tpu.memory_space<vmem>>, vector<1x128xf32>,
    %34 = arith.subf %20, %30 : vector<1x128xf32>
    %c1 = arith.constant 1 : index
    %c0_16 = arith.constant 0 : index
    %35 = vector.load %arg4[%c1, %c0_16] : memref<2x128xf32, #tpu.memory_space<vmem>>, vector<1x128xf32>
    tpu.vector_store %arg4[%c1, %c0_16], %34 {strides = array<i32>} : memref<2x128xf32, #tpu.memory_space<vmem>>, vector<1x128xf32>,
    return
  }
  func.func @transform_0(%arg0: i32) -> (i32, i32) {
    %c0_i32 = arith.constant 0 : i32
    %c0_i32_0 = arith.constant 0 : i32
    return %c0_i32, %arg0 : i32, i32
  }
  func.func @transform_1(%arg0: i32) -> (i32, i32) {
    %c0_i32 = arith.constant 0 : i32
    %c0_i32_0 = arith.constant 0 : i32
    %c0_i32_1 = arith.constant 0 : i32
    return %c0_i32, %c0_i32_0 : i32, i32
  }
  func.func @transform_2(%arg0: i32) -> (i32, i32) {
    %c0_i32 = arith.constant 0 : i32
    %c0_i32_0 = arith.constant 0 : i32
    %c0_i32_1 = arith.constant 0 : i32
    return %c0_i32, %c0_i32_0 : i32, i32
  }
  func.func @transform_3(%arg0: i32) -> (i32, i32) {
    %c0_i32 = arith.constant 0 : i32
    %c0_i32_0 = arith.constant 0 : i32
    return %c0_i32, %arg0 : i32, i32
  }
}

</mosaic_0001>

<llo_original>
// kernel: tpu_custom_call.1
$region0: #{tpu_custom_call.1}
  #allocation0 [shape = 'u32[]', space=smem, size = 0x4, offset = 0x4, fixed_abs, tag = 'smem constant byte address 0x4 - core index']
  #allocation1 [shape = 'u32[144,128]{1,0:T(1,128)}', space=vmem, size = 0x12000, scoped, tag = 'internal scratch']
  %s0 = inlined_call_operand.hbm [shape: f32[30,128], index: 0, kind: input, shape index: {}]
  %s1 = inlined_call_operand.vmem [shape: f32[2,30], index: 1, kind: input, shape index: {}]
  %s2 = inlined_call_operand.vmem [shape: f32[2,1], index: 2, kind: input, shape index: {}]
  %s3 = inlined_call_operand.hbm [shape: f32[2,128], index: 3, kind: output, shape index: {}]
  %s4 = sld [smem:[#allocation0]]
  $region26: #{tpu_custom_call.1} parent=0
    _
  %s6 = ssub.s32 1, %s4
  %s7 = scalar_select 0, %s6, %s4
  $region1: #{tpu_custom_call.1} parent=0
    #allocation2 [shape = 'u8[16384]{0}', space=vmem, size = 0x4000, scoped, tag = 'input window, operand 0, single buffered']
    #allocation3 [shape = 's32[1]{0}', space=sflag, size = 0x4, scoped, tag = 'scoped memory for tpu_custom_call.1']
    #allocation4 [shape = 's32[1]{0}', space=sflag, size = 0x4, scoped, tag = 'scoped memory for tpu_custom_call.1']
    #allocation5 [shape = 'u8[1024]{0}', space=vmem, size = 0x400, scoped, tag = 'output window, operand 0, single buffered']
    %8 = vsyncpa [#allocation3], 0
    %9 = vsyncpa [#allocation4], 0
    // Predicated region
    $region2: #{tpu_custom_call.1} parent=1 // pred_check
      _
    $region3: #{tpu_custom_call.1} parent=1 // pred_check_branch
      %11 = sbr.rel (0) target = $region5
    $region4: #{tpu_custom_call.1} parent=1 // pred_region
      %s13 = ssub.s32 512, 512
      %14 = vsyncadd [#allocation3], %s13
      %s15 = sshll.u32 [#allocation2], 4
      %s16 = int_to_ptr.vmem [resolvable:$true] %s15
      %21 = dma.hbm_to_vmem [thread:$0]  %s0, 512, %s16, [#allocation3], 128, 128, 8
    $region5: #{tpu_custom_call.1} parent=1 // pred_fallthru
      _
    // Predicated region
    $region6: #{tpu_custom_call.1} parent=1 // pred_check
      _
    $region7: #{tpu_custom_call.1} parent=1 // pred_check_branch
      %23 = sbr.rel (0) target = $region9
    $region8: #{tpu_custom_call.1} parent=1 // pred_region
      _
    $region9: #{tpu_custom_call.1} parent=1 // pred_fallthru
      _
    // Predicated region
    $region10: #{tpu_custom_call.1} parent=1 // pred_check
      _
    $region11: #{tpu_custom_call.1} parent=1 // pred_check_branch
      %25 = sbr.rel (0) target = $region13
    $region12: #{tpu_custom_call.1} parent=1 // pred_region
      _
    $region13: #{tpu_custom_call.1} parent=1 // pred_fallthru
      _
    // Predicated region
    $region14: #{tpu_custom_call.1} parent=1 // pred_check
      _
    $region15: #{tpu_custom_call.1} parent=1 // pred_check_branch
      %27 = sbr.rel (0) target = $region17
    $region16: #{tpu_custom_call.1} parent=1 // pred_region
      %28 = dma.done [#allocation3], 512
    $region17: #{tpu_custom_call.1} parent=1 // pred_fallthru
      _
    %v29 = vld [vmem:[#allocation2] sm:$0xff]
    %v30 = vld [vmem:[#allocation2 + $0x8] sm:$0xff]
    %v31 = vld [vmem:[#allocation2 + $0x10] sm:$0xff]
    %v32 = vld [vmem:[#allocation2 + $0x18] sm:$0x3f]
    %v33 = vsub.f32 %v29, 30.0
    %v34 = vsub.f32 %v30, 30.0
    %v35 = vsub.f32 %v31, 30.0
    %v36 = vsub.f32 %v32, 30.0
    %v37 = vrcp.pop 15.0
    %v38 = vmul.f32 %v33, %v37
    %v39 = vmul.f32 %v34, %v37
    %v40 = vmul.f32 %v35, %v37
    %v41 = vmul.f32 %v36, %v37
    %v42 = vmul.f32 %v38, 2.0
    %v43 = vmul.f32 %v39, 2.0
    %v44 = vmul.f32 %v40, 2.0
    %v45 = vmul.f32 %v41, 2.0
    %v46 = vtanh.pop %v42
    %v47 = vtanh.pop %v43
    %v48 = vtanh.pop %v44
    %v49 = vtanh.pop %v45
    %v50 = vld [vmem:[%s1] sm:$0x3]
    %v51 = vld [vmem:[%s2] sm:$0x3]
    %53 = vset.pattern.permute.xlu0 0
    %54 = vperm.xlu0 %53, %v51
    %v55 = vpop.permute.xlu0 %54
    %vm57 = vcmask 244736
    %v59 = vsel %vm57, %v50, 0
    %vm61 = vcmask 1045504
    %v63 = vsel %vm61, %v49, 0
    %65 = vmatprep.subr.mxu0 0.0
    %66 = vmatpush1.msra.mxu0 0.0
    %67 = vmatprep.subr.mxu0 0.0
    %68 = vmatpush1.msra.mxu0 0.0
    %69 = vmatprep.subr.mxu0 0.0
    %70 = vmatpush1.msra.mxu0 0.0
    %71 = vmatprep.subr.mxu0 0.0
    %72 = vmatpush1.msra.mxu0 0.0
    %73 = vmatprep.subr.mxu0 0.0
    %74 = vmatpush1.msra.mxu0 0.0
    %75 = vmatprep.subr.mxu0 0.0
    %76 = vmatpush1.msra.mxu0 0.0
    %77 = vmatprep.subr.mxu0 0.0
    %78 = vmatpush1.msra.mxu0 0.0
    %79 = vmatprep.subr.mxu0 0.0
    %80 = vmatpush1.msra.mxu0 0.0
    %81 = vmatprep.subr.mxu0 0.0
    %82 = vmatpush1.msra.mxu0 0.0
    %83 = vmatprep.subr.mxu0 0.0
    %84 = vmatpush1.msra.mxu0 0.0
    %85 = vmatprep.subr.mxu0 0.0
    %86 = vmatpush1.msra.mxu0 0.0
    %87 = vmatprep.subr.mxu0 0.0
    %88 = vmatpush1.msra.mxu0 0.0
    %89 = vmatprep.subr.mxu0 0.0
    %90 = vmatpush1.msra.mxu0 %v63
    %91 = vmatprep.subr.mxu0 0.0
    %92 = vmatpush1.msra.mxu0 %v48
    %93 = vmatprep.subr.mxu0 0.0
    %94 = vmatpush1.msra.mxu0 %v47
    %95 = vmatprep.subr.mxu0 0.0
    %96 = vmatpush1.msra.mxu0 %v46
    %97 = vmatprep.subr.mxu0 0.0
    %98 = vmatpush2.msra.mxu0 0.0
    %99 = vmatprep.subr.mxu0 0.0
    %100 = vmatpush2.msra.mxu0 0.0
    %101 = vmatprep.subr.mxu0 0.0
    %102 = vmatpush2.msra.mxu0 0.0
    %103 = vmatprep.subr.mxu0 0.0
    %104 = vmatpush2.msra.mxu0 0.0
    %105 = vmatprep.subr.mxu0 0.0
    %106 = vmatpush2.msra.mxu0 0.0
    %107 = vmatprep.subr.mxu0 0.0
    %108 = vmatpush2.msra.mxu0 0.0
    %109 = vmatprep.subr.mxu0 0.0
    %110 = vmatpush2.msra.mxu0 0.0
    %111 = vmatprep.subr.mxu0 0.0
    %112 = vmatpush2.msra.mxu0 0.0
    %113 = vmatprep.subr.mxu0 0.0
    %114 = vmatpush2.msra.mxu0 0.0
    %115 = vmatprep.subr.mxu0 0.0
    %116 = vmatpush2.msra.mxu0 0.0
    %117 = vmatprep.subr.mxu0 0.0
    %118 = vmatpush2.msra.mxu0 0.0
    %119 = vmatprep.subr.mxu0 0.0
    %120 = vmatpush2.msra.mxu0 0.0
    %121 = vmatprep.subr.mxu0 0.0
    %122 = vmatpush2.msra.mxu0 0.0
    %123 = vmatprep.subr.mxu0 0.0
    %124 = vmatpush2.msra.mxu0 0.0
    %125 = vmatprep.subr.mxu0 0.0
    %126 = vmatpush2.msra.mxu0 0.0
    %127 = vmatprep.subr.mxu0 0.0
    %128 = vmatpush2.msra.mxu0 0.0
    %129 = vmatprep.mubr.f32.mxu0 0.0
    %130 = vmatmul.mubr.f32.gmra.mxu0 %v59
    %v131 = vpop.f32.mrf.mxu0
    %v132 = vadd.f32 %v55, %v131
    %v133 = vpop.f32.mrf.mxu0
    %134 = vdwg.mxu0
    %v135 = vmul.f32 %v132, 0.5
    %v136 = vtanh.pop %v135
    %v137 = vmul.f32 %v136, 2.0
    %v139 = vrot.slane %v137, 7
    %v141 = vsub.f32 %v137, %v139
    %v142 = vmax.f32 %v141, 0.0
    %v143 = vand.u32 2147483647, %v141
    %v144 = vsub.f32 0.0, %v143
    %v145 = vmul.f32 %v144, 1.442695
    %v146 = vpow.pop %v145
    %v147 = vadd.f32 %v146, 1.0
    %v148 = vlog2.pop %v147
    %v149 = vmul.f32 %v148, 0.6931472
    %v150 = vadd.f32 %v142, %v149
    %v151 = vsub.f32 0.0, %v150
    %152 = vst [vmem:[#allocation5 - $0x1] sm:$0x2] %v151
    %v153 = vsub.f32 %v141, %v150
    %154 = vst [vmem:[#allocation5] sm:$0x2] %v153
    // Predicated region
    $region18: #{tpu_custom_call.1} parent=1 // pred_check
      _
    $region19: #{tpu_custom_call.1} parent=1 // pred_check_branch
      %156 = sbr.rel (0) target = $region21
    $region20: #{tpu_custom_call.1} parent=1 // pred_region
      %s158 = ssub.s32 32, 32
      %159 = vsyncadd [#allocation4], %s158
      %s161 = sshll.u32 [#allocation5], 4
      %s162 = int_to_ptr.vmem [resolvable:$true] %s161
      %164 = dma.vmem_to_hbm [thread:$0]  %s162, 32, %s3, [#allocation4]
    $region21: #{tpu_custom_call.1} parent=1 // pred_fallthru
      _
    // Predicated region
    $region22: #{tpu_custom_call.1} parent=1 // pred_check
      _
    $region23: #{tpu_custom_call.1} parent=1 // pred_check_branch
      %166 = sbr.rel (0) target = $region25
    $region24: #{tpu_custom_call.1} parent=1 // pred_region
      %167 = dma.done [#allocation4], 32
    $region25: #{tpu_custom_call.1} parent=1 // pred_fallthru
      _
    %168 = vsyncpa [#allocation3], 1
    %169 = vsyncpa [#allocation4], 1

</llo_original>
